<compile_context>
chip_gen: v7x
topology: tpu7x:2x2x1
jax: 0.10.0
libtpu: 0.0.40
codegen_flags: <defaults>
</compile_context>

<pallas_src>
import jax
import jax.numpy as jnp
from jax import lax
from jax.experimental import pallas as pl
from jax.experimental.pallas import tpu as pltpu


# ----------------------------------------------------------------------------
# Kernel: fused (Cout_total, CKp) @ (CKp, Mb) GEMM + bias + ReLU, bf16 output.
# ----------------------------------------------------------------------------
def _gemm_bias_relu_kernel(w_ref, p_ref, bias_ref, o_ref):
    """w_ref:    (Cout_t, CKp)  bf16  fused im2col weights (BN scale folded in)
       p_ref:    (CKp, Mb)      bf16  shared im2col patch block (lane-dense minor)
       bias_ref: (Cout_t, 1)    f32   folded BN bias (includes conv bias)
       o_ref:    (Cout_t, Mb)   bf16  lane-dense output block (NCHW-compatible)
    """
    acc = jnp.dot(w_ref[...], p_ref[...], preferred_element_type=jnp.float32)
    o_ref[...] = jnp.maximum(acc + bias_ref[...], 0.0).astype(o_ref.dtype)


# ----------------------------------------------------------------------------
# Generation-aware M-block / VMEM-limit selection.
# ----------------------------------------------------------------------------
def _choose_m_block(ck_pad, cout_t, hw, n_images):
    try:
        info = pltpu.get_tpu_info()
        vmem_cap = int(getattr(info, "vmem_capacity_bytes", 64 << 20))
    except Exception:  # pragma: no cover - conservative fallback off-TPU
        vmem_cap = 64 << 20

    # v5e/v6e (128 MiB VMEM) -> 32 MiB block budget, 64 MiB scoped limit.
    # v7x    ( 64 MiB VMEM) -> 16 MiB block budget, 32 MiB scoped limit.
    budget = max(8 << 20, min(32 << 20, vmem_cap // 4))
    vmem_limit = int(max(32 << 20, min(100 << 20, vmem_cap // 2)))

    resident = cout_t * ck_pad * 2 + cout_t * 4            # weights (bf16) + bias (f32)
    per_col = 2 * (ck_pad * 2 + cout_t * 2)                # 2x (bf16 patch col + bf16 out col)
    mb = (budget - resident) // max(per_col, 1)
    mb = max(128, min(mb, 32 * 1024))
    mb = (mb // 128) * 128

    hw_ceil = pl.cdiv(hw, 128) * 128
    mb = min(mb, hw_ceil)
    # Guarantee >= 2 parallel grid steps (batch x m-blocks) so both v7x
    # TensorCores get work and the DMA/compute pipeline has something to hide.
    if n_images == 1 and hw_ceil // mb < 2 and hw_ceil >= 256:
        mb = max(128, ((hw_ceil // 2) // 128) * 128)
    return mb, vmem_limit


# ----------------------------------------------------------------------------
# Fused multi-path PatchEmbed as one GEMM.
# ----------------------------------------------------------------------------
def _fused_patch_embed_gemm(x_nchw, w_all, b_all, *, pad_max, k_tap, out_dtype):
    """x_nchw: (N, Cin, H, W); w_all: (Cout_t, Ktap*Ktap*Cin); b_all: (Cout_t,)."""
    N, Cin, H, W = x_nchw.shape
    Cout_t, CK = w_all.shape
    assert CK == k_tap * k_tap * Cin
    HW = H * W
    CKp = ((CK + 15) // 16) * 16                           # contraction mult. of 16 (bf16)

    Mb, vmem_limit = _choose_m_block(CKp, Cout_t, HW, N)
    HWp = pl.cdiv(HW, Mb) * Mb

    # --- shared im2col at the union tap grid (layout plumbing in XLA) --------
    # TODO(synk): replace with in-kernel band DMA + per-kh matmuls for large H*W.
    x_pad = jnp.pad(x_nchw, ((0, 0), (0, 0), (pad_max, pad_max), (pad_max, pad_max)))
    slabs = [x_pad[:, :, kh:kh + H, kw:kw + W]
             for kh in range(k_tap) for kw in range(k_tap)]   # each (N, Cin, H, W)
    p = jnp.stack(slabs, axis=1).reshape(N, CK, HW)           # rows ordered (kh, kw, cin)
    p = jnp.pad(p, ((0, 0), (0, CKp - CK), (0, HWp - HW))).astype(jnp.bfloat16)

    w = jnp.pad(w_all, ((0, 0), (0, CKp - CK))).astype(jnp.bfloat16)   # (Cout_t, CKp)
    bias = b_all.reshape(Cout_t, 1).astype(jnp.float32)

    out = pl.pallas_call(
        _gemm_bias_relu_kernel,
        out_shape=jax.ShapeDtypeStruct((N, Cout_t, HWp), out_dtype),
        grid=(N, HWp // Mb),
        in_specs=[
            pl.BlockSpec((Cout_t, CKp), lambda n, m: (0, 0)),        # resident weights
            pl.BlockSpec((None, CKp, Mb), lambda n, m: (n, 0, m)),   # streamed patches
            pl.BlockSpec((Cout_t, 1), lambda n, m: (0, 0)),          # resident bias
        ],
        out_specs=pl.BlockSpec((None, Cout_t, Mb), lambda n, m: (n, 0, m)),
        compiler_params=pltpu.CompilerParams(
            dimension_semantics=("parallel", "parallel"),
            vmem_limit_bytes=vmem_limit),
    )(w, p, bias)

    # Drop padded columns; layout is already NCHW-compatible (no transpose).
    return out[:, :, :HW].reshape(N, Cout_t, H, W)


# ----------------------------------------------------------------------------
# Parameters (mirror MSP.__init__ shapes) and forward.
# ----------------------------------------------------------------------------
def init_msp_params(key, in_chans, embed_dim, num_path=3,
                    kernel_size=(3, 5, 7), kernel_size2=(5, 7, 11)):
    """Deterministic synthetic parameters mirroring MSP.__init__ shapes."""
    ks = kernel_size2 if in_chans == 3 else kernel_size
    eps = 1e-5
    params = []
    for idx in range(num_path):
        K = int(ks[idx])
        key, k1, k2, k3, k4, k5, k6 = jax.random.split(key, 7)
        w_oihw = 0.05 * jax.random.normal(k1, (embed_dim, in_chans, K, K), jnp.float32)
        conv_b = 0.05 * jax.random.normal(k2, (embed_dim,), jnp.float32)
        gamma = 1.0 + 0.1 * jax.random.normal(k3, (embed_dim,), jnp.float32)
        beta = 0.1 * jax.random.normal(k4, (embed_dim,), jnp.float32)
        run_mean = 0.1 * jax.random.normal(k5, (embed_dim,), jnp.float32)
        run_var = jnp.abs(1.0 + 0.1 * jax.random.normal(k6, (embed_dim,), jnp.float32))
        scale = gamma / jnp.sqrt(run_var + eps)            # folded BN scale (eval mode)
        bias = beta + scale * (conv_b - run_mean)          # folded BN bias (incl. conv bias)
        params.append(dict(w_oihw=w_oihw, scale=scale, bias=bias,
                           kernel_size=K, padding=K // 2,
                           # kept only for the pure-JAX reference check:
                           conv_b=conv_b, gamma=gamma, beta=beta,
                           run_mean=run_mean, run_var=run_var, eps=eps))
    return params


def msp_forward(x_nchw, params, out_dtype=jnp.bfloat16):
    """MSP.forward: returns a list of PatchEmbed outputs, NCHW like PyTorch.

    Outputs are bf16 (per perf review, halves writeback HBM); pass
    out_dtype=jnp.float32 for f32 parity with the PyTorch module.
    """
    N, Cin, H, W = x_nchw.shape
    num_path = len(params)
    embed_dim = params[0]["w_oihw"].shape[0]
    pad_max = max(p["padding"] for p in params)
    k_tap = 2 * pad_max + 1                                 # union tap grid (stride=1)

    # --- build fused weights / bias: embed each path's taps into the union
    #     grid, fold BN scale into the weights (f32), concatenate along Cout. --
    w_rows, biases = [], []
    for p in params:
        K = p["kernel_size"]
        off = pad_max - p["padding"]
        assert 0 <= off and off + K <= k_tap, "tap grid does not cover this path"
        w_full = jnp.zeros((embed_dim, Cin, k_tap, k_tap), jnp.float32)
        w_full = w_full.at[:, :, off:off + K, off:off + K].set(p["w_oihw"])
        w_full = w_full * p["scale"][:, None, None, None]   # fold BN scale (f32)
        # rows ordered (kh, kw, cin) to match the shared im2col
        w_mat = jnp.transpose(w_full, (2, 3, 1, 0)).reshape(k_tap * k_tap * Cin, embed_dim).T
        w_rows.append(w_mat)
        biases.append(p["bias"])
    w_all = jnp.concatenate(w_rows, axis=0)                 # (num_path*embed, CK)
    b_all = jnp.concatenate(biases, axis=0)                 # (num_path*embed,)

    out = _fused_patch_embed_gemm(x_nchw, w_all, b_all,
                                  pad_max=pad_max, k_tap=k_tap, out_dtype=out_dtype)
    return [out[:, i * embed_dim:(i + 1) * embed_dim] for i in range(num_path)]


# ----------------------------------------------------------------------------
# Pure-JAX reference (XLA conv, f32) for correctness checking.
# ----------------------------------------------------------------------------
def _reference_patch_embed(x_nchw, p):
    y = lax.conv_general_dilated(
        x_nchw, p["w_oihw"], window_strides=(1, 1),
        padding=[(p["padding"], p["padding"])] * 2,
        dimension_numbers=("NCHW", "OIHW", "NCHW"))
    y = y + p["conv_b"][None, :, None, None]
    y = (y - p["run_mean"][None, :, None, None]) / jnp.sqrt(
        p["run_var"][None, :, None, None] + p["eps"])
    y = y * p["gamma"][None, :, None, None] + p["beta"][None, :, None, None]
    return jnp.maximum(y, 0.0)


if __name__ == "__main__":
    key = jax.random.PRNGKey(0)
    kx, kp = jax.random.split(key)

    N, Cin, H, W = 2, 4, 16, 16        # in_chans=4 (!=3) -> kernel sizes [3,5,7]
    embed_dim = 32

    x = jax.random.normal(kx, (N, Cin, H, W), jnp.float32)     # NCHW like PyTorch
    params = init_msp_params(kp, in_chans=Cin, embed_dim=embed_dim)

    fwd = jax.jit(lambda xx: msp_forward(xx, params))
    outs = fwd(x)
    outs = [jax.block_until_ready(o) for o in outs]

    for o, p in zip(outs, params):
        assert o.shape == (N, embed_dim, H, W), o.shape
        ref = _reference_patch_embed(x, p)
        err = float(jnp.max(jnp.abs(o.astype(jnp.float32) - ref)))
        # bf16 matmul operands + bf16 output vs f32 reference -> loose tolerance.
        assert err < 6e-2, f"mismatch vs reference: max abs err {err}"

    print("KERNEL_OK")
</pallas_src>

<mosaic_0001>
module attributes {stable_mosaic.version = 11 : i64} {
  func.func @_gemm_bias_relu_kernel(%arg0: i32, %arg1: i32, %arg2: memref<96x208xbf16, #tpu.memory_space<vmem>>, %arg3: memref<1x208x256xbf16, #tpu.memory_space<vmem>>, %arg4: memref<96x1xf32, #tpu.memory_space<vmem>>, %arg5: memref<1x96x256xbf16, #tpu.memory_space<vmem>>) attributes {dimension_semantics = [#tpu.dimension_semantics<parallel>, #tpu.dimension_semantics<parallel>], iteration_bounds = array<i64: 2, 1>, scalar_prefetch = 0 : i64, scratch_operands = 0 : i64, tpu.core_type = #tpu.core_type<tc>, window_params = [{pipeline_mode = #tpu.pipeline_mode<synchronous>, transform_indices = @transform_0, window_bounds = array<i64: 96, 208>}, {transform_indices = @transform_1, window_bounds = array<i64: 1, 208, 256>}, {pipeline_mode = #tpu.pipeline_mode<synchronous>, transform_indices = @transform_2, window_bounds = array<i64: 96, 1>}, {transform_indices = @transform_3, window_bounds = array<i64: 1, 96, 256>}]} {
    %c0 = arith.constant 0 : index
    %c0_0 = arith.constant 0 : index
    %0 = vector.load %arg2[%c0, %c0_0] : memref<96x208xbf16, #tpu.memory_space<vmem>>, vector<96x208xbf16>
    %c0_1 = arith.constant 0 : index
    %c0_2 = arith.constant 0 : index
    %c0_3 = arith.constant 0 : index
    %1 = vector.load %arg3[%c0_1, %c0_2, %c0_3] : memref<1x208x256xbf16, #tpu.memory_space<vmem>>, vector<1x208x256xbf16>
    %2 = vector.shape_cast %1 : vector<1x208x256xbf16> to vector<208x256xbf16>
    %cst = arith.constant dense<0.000000e+00> : vector<96x256xf32>
    %3 = tpu.matmul %0, %2, %cst {dimension_numbers = #tpu.dot_dimension_numbers<[1], [0], [0], [1], [0, 0, 1, 1], [], []>} : vector<96x208xbf16>, vector<208x256xbf16>, vector<96x256xf32> -> vector<96x256xf32>
    %c0_4 = arith.constant 0 : index
    %c0_5 = arith.constant 0 : index
    %4 = vector.load %arg4[%c0_4, %c0_5] : memref<96x1xf32, #tpu.memory_space<vmem>>, vector<96x1xf32>
    %5 = vector.broadcast %4 : vector<96x1xf32> to vector<96x256xf32>
    %6 = arith.addf %3, %5 : vector<96x256xf32>
    %cst_6 = arith.constant 0.000000e+00 : f32
    %7 = vector.broadcast %cst_6 : f32 to vector<96x256xf32>
    %8 = arith.maximumf %6, %7 : vector<96x256xf32>
    %9 = arith.truncf %8 : vector<96x256xf32> to vector<96x256xbf16>
    %c0_7 = arith.constant 0 : index
    %c0_8 = arith.constant 0 : index
    %c0_9 = arith.constant 0 : index
    %10 = vector.load %arg5[%c0_7, %c0_8, %c0_9] : memref<1x96x256xbf16, #tpu.memory_space<vmem>>, vector<1x96x256xbf16>
    %11 = vector.shape_cast %10 : vector<1x96x256xbf16> to vector<96x256xbf16>
    %12 = vector.shape_cast %9 : vector<96x256xbf16> to vector<1x96x256xbf16>
    tpu.vector_store %arg5[%c0_7, %c0_8, %c0_9], %12 {strides = array<i32>} : memref<1x96x256xbf16, #tpu.memory_space<vmem>>, vector<1x96x256xbf16>,
    return
  }
  func.func @transform_0(%arg0: i32, %arg1: i32) -> (i32, i32) {
    %c0_i32 = arith.constant 0 : i32
    %c0_i32_0 = arith.constant 0 : i32
    %c0_i32_1 = arith.constant 0 : i32
    return %c0_i32, %c0_i32_0 : i32, i32
  }
  func.func @transform_1(%arg0: i32, %arg1: i32) -> (i32, i32, i32) {
    %c0_i32 = arith.constant 0 : i32
    %c0_i32_0 = arith.constant 0 : i32
    return %arg0, %c0_i32, %arg1 : i32, i32, i32
  }
  func.func @transform_2(%arg0: i32, %arg1: i32) -> (i32, i32) {
    %c0_i32 = arith.constant 0 : i32
    %c0_i32_0 = arith.constant 0 : i32
    %c0_i32_1 = arith.constant 0 : i32
    return %c0_i32, %c0_i32_0 : i32, i32
  }
  func.func @transform_3(%arg0: i32, %arg1: i32) -> (i32, i32, i32) {
    %c0_i32 = arith.constant 0 : i32
    %c0_i32_0 = arith.constant 0 : i32
    return %arg0, %c0_i32, %arg1 : i32, i32, i32
  }
}

</mosaic_0001>

<llo_original>
// kernel: _lambda_.1
$region0: #{_lambda_.1}
  #allocation0 [shape = 'u32[]', space=smem, size = 0x4, offset = 0x4, fixed_abs, tag = 'smem constant byte address 0x4 - core index']
  #allocation1 [shape = 'u32[144,128]{1,0:T(1,128)}', space=vmem, size = 0x12000, scoped, tag = 'internal scratch']
  %s0 = inlined_call_operand.vmem [shape: bf16[96,208], index: 0, kind: input, shape index: {}]
  %s1 = inlined_call_operand.vmem [shape: bf16[2,208,256], index: 1, kind: input, shape index: {}]
  %s2 = inlined_call_operand.vmem [shape: f32[96,1], index: 2, kind: input, shape index: {}]
  %s3 = inlined_call_operand.vmem [shape: bf16[2,96,256], index: 3, kind: output, shape index: {}]
  %s4 = sld [smem:[#allocation0]]
  $region45: #{_lambda_.1} parent=0
    _
  %s6 = ssub.s32 1, %s4
  %s7 = scalar_select 0, %s6, %s4
  loop: start=0, step=1, limit=4
  $region2: #{_lambda_.1} parent=0 // loop_pre_header
    _
  $region3: #{_lambda_.1} parent=0 // loop_header
    %s9 = sphi 0, %s13
    %p10 = scmp.ge.s32.totalorder %s9, 4
    %s16 = sphi 0, %s28
    %s17 = sphi 0, %s24
    %s18 = sphi 0, %s16
    %s19 = sphi 0, %s17
    %s20 = sphi 0, %s18
    %s21 = sphi 0, %s19
    %s29 = sphi 0, %s29
    %s31 = sphi 0, %s29
    %s32 = sphi 0, %s31
    %s46 = sphi 0, %s32
    %s54 = sphi 0, %s56
    %s57 = sphi 0, %s54
    %s58 = sphi 0, %s57
    %s74 = sphi 0, %s58
    %s78 = sphi 0, %s78
    %s80 = sphi 0, %s78
    %s81 = sphi 0, %s80
    %s95 = sphi 0, %s81
    %s103 = sphi 0, %s105
    %s106 = sphi 0, %s103
    %s107 = sphi 0, %s106
    %s123 = sphi 0, %s107
  $region4: #{_lambda_.1} parent=0 // loop_header_branch
    %12 = sbr.rel (%p10) target = $region8
  $region5: #{_lambda_.1} parent=0 // loop_body
    %s14 = ssub.s32 %s9, 1
    %s15 = ssub.s32 %s9, 2
    %s22 = sadd.s32 1, %s17
    %p23 = scmp.ge.s32.totalorder %s22, 1
    %s24 = scalar_select %p23, 0, %s22
    %s25 = sadd.s32 1, %s16
    %s26 = scalar_select %p23, %s25, %s16
    %p27 = scmp.ge.s32.totalorder %s26, 2
    %s28 = scalar_select %p27, 0, %s26
    %s30 = sadd.s32 %s29, 1
    %p33 = scmp.eq.s32.totalorder %s9, 1
    %p34 = scmp.ne.s32.totalorder %s29, %s31
    %p35 = scmp.eq.s32.totalorder %s9, 0
    %p36 = por %p34, %p35
    %p37 = scmp.ne.s32.totalorder %s29, %s31
    %p38 = scmp.eq.s32.totalorder %s14, 1
    %p39 = por %p37, %p38
    %p40 = scmp.ne.s32.totalorder %s31, %s32
    %p41 = scmp.eq.s32.totalorder %s14, 0
    %p42 = por %p40, %p41
    %p43 = scmp.ne.s32.totalorder %s31, %s32
    %p44 = scmp.eq.s32.totalorder %s15, 1
    %p45 = por %p43, %p44
    %p47 = scmp.ne.s32.totalorder %s32, %s46
    %p48 = scmp.eq.s32.totalorder %s15, 0
    %p49 = por %p47, %p48
    %s50 = ssub.s32 %s16, %s28
    %s51 = ssub.s32 %s17, %s24
    %s52 = sor.u32 %s50, %s51
    %p53 = scmp.eq.s32.totalorder %s52, 0
    %s55 = sadd.s32 %s54, 1
    %s56 = scalar_select %p53, %s54, %s55
    %p59 = pneg %p53
    %p60 = scmp.eq.s32.totalorder %s9, 1
    %p61 = por %p59, %p60
    %p62 = scmp.ne.s32.totalorder %s54, %s57
    %p63 = scmp.eq.s32.totalorder %s9, 0
    %p64 = por %p62, %p63
    %p65 = scmp.ne.s32.totalorder %s54, %s57
    %p66 = scmp.eq.s32.totalorder %s14, 1
    %p67 = por %p65, %p66
    %p68 = scmp.ne.s32.totalorder %s57, %s58
    %p69 = scmp.eq.s32.totalorder %s14, 0
    %p70 = por %p68, %p69
    %p71 = scmp.ne.s32.totalorder %s57, %s58
    %p72 = scmp.eq.s32.totalorder %s15, 1
    %p73 = por %p71, %p72
    %p75 = scmp.ne.s32.totalorder %s58, %s74
    %p76 = scmp.eq.s32.totalorder %s15, 0
    %p77 = por %p75, %p76
    %s79 = sadd.s32 %s78, 1
    %p82 = scmp.eq.s32.totalorder %s9, 1
    %p83 = scmp.ne.s32.totalorder %s78, %s80
    %p84 = scmp.eq.s32.totalorder %s9, 0
    %p85 = por %p83, %p84
    %p86 = scmp.ne.s32.totalorder %s78, %s80
    %p87 = scmp.eq.s32.totalorder %s14, 1
    %p88 = por %p86, %p87
    %p89 = scmp.ne.s32.totalorder %s80, %s81
    %p90 = scmp.eq.s32.totalorder %s14, 0
    %p91 = por %p89, %p90
    %p92 = scmp.ne.s32.totalorder %s80, %s81
    %p93 = scmp.eq.s32.totalorder %s15, 1
    %p94 = por %p92, %p93
    %p96 = scmp.ne.s32.totalorder %s81, %s95
    %p97 = scmp.eq.s32.totalorder %s15, 0
    %p98 = por %p96, %p97
    %s99 = ssub.s32 %s16, %s28
    %s100 = ssub.s32 %s17, %s24
    %s101 = sor.u32 %s99, %s100
    %p102 = scmp.eq.s32.totalorder %s101, 0
    %s104 = sadd.s32 %s103, 1
    %s105 = scalar_select %p102, %s103, %s104
    %p108 = pneg %p102
    %p109 = scmp.eq.s32.totalorder %s9, 1
    %p110 = por %p108, %p109
    %p111 = scmp.ne.s32.totalorder %s103, %s106
    %p112 = scmp.eq.s32.totalorder %s9, 0
    %p113 = por %p111, %p112
    %p114 = scmp.ne.s32.totalorder %s103, %s106
    %p115 = scmp.eq.s32.totalorder %s14, 1
    %p116 = por %p114, %p115
    %p117 = scmp.ne.s32.totalorder %s106, %s107
    %p118 = scmp.eq.s32.totalorder %s14, 0
    %p119 = por %p117, %p118
    %p120 = scmp.ne.s32.totalorder %s106, %s107
    %p121 = scmp.eq.s32.totalorder %s15, 1
    %p122 = por %p120, %p121
    %p124 = scmp.ne.s32.totalorder %s107, %s123
    %p125 = scmp.eq.s32.totalorder %s15, 0
    %p126 = por %p124, %p125
    %p127 = scmp.le.s32.totalorder 1, %s9
    %p128 = scmp.lt.s32.totalorder %s9, 3
    %p129 = pnand %p127, %p128
    %p130 = pneg %p129
    // Predicated region
    $region9: #{_lambda_.1} parent=5 // pred_check
      _
    $region10: #{_lambda_.1} parent=5 // pred_check_branch
      %132 = sbr.rel (%p129) target = $region12
    $region11: #{_lambda_.1} parent=5 // pred_region
      %s133 = ssub.s32 %s9, 1
      // Predicated region
      $region13: #{_lambda_.1} parent=11 // pred_check
        %p134 = pneg %p42
      $region14: #{_lambda_.1} parent=11 // pred_check_branch
        %136 = sbr.rel (%p134) target = $region16
      $region15: #{_lambda_.1} parent=11 // pred_region
        _
      $region16: #{_lambda_.1} parent=11 // pred_fallthru
        _
      // Predicated region
      $region17: #{_lambda_.1} parent=11 // pred_check
        %p137 = pneg %p91
      $region18: #{_lambda_.1} parent=11 // pred_check_branch
        %139 = sbr.rel (%p137) target = $region20
      $region19: #{_lambda_.1} parent=11 // pred_region
        _
      $region20: #{_lambda_.1} parent=11 // pred_fallthru
        _
    $region12: #{_lambda_.1} parent=5 // pred_fallthru
      _
    %p140 = scmp.lt.s32.totalorder %s9, 2
    // Predicated region
    $region21: #{_lambda_.1} parent=5 // pred_check
      %p141 = pneg %p140
    $region22: #{_lambda_.1} parent=5 // pred_check_branch
      %143 = sbr.rel (%p141) target = $region24
    $region23: #{_lambda_.1} parent=5 // pred_region
      // Predicated region
      $region25: #{_lambda_.1} parent=23 // pred_check
        %p144 = pneg %p64
      $region26: #{_lambda_.1} parent=23 // pred_check_branch
        %146 = sbr.rel (%p144) target = $region28
      $region27: #{_lambda_.1} parent=23 // pred_region
        %s147 = smul.u32 2, %s17
        %p148 = scmp.lt.s32.totalorder %s16, 1
        %s149 = scalar_select %p148, %s16, 1
        %p150 = scmp.lt.s32.totalorder %s147, 1
        %s151 = scalar_select %p150, %s147, 1
        %s152 = smul.addr %s149, 52
        %s153 = sadd.s32 %s151, %s152
        %s154 = smul.addr %s153, 4
        %s155 = scalar_lea.vmem %s1, %s154
        %s156 = smul.u32 2, %s17
      $region28: #{_lambda_.1} parent=23 // pred_fallthru
        _
    $region24: #{_lambda_.1} parent=5 // pred_fallthru
      _
    %p157 = scmp.le.s32.totalorder 1, %s9
    %p158 = scmp.lt.s32.totalorder %s9, 3
    %p159 = pnand %p157, %p158
    %p160 = pneg %p159
    // Predicated region
    $region29: #{_lambda_.1} parent=5 // pred_check
      _
    $region30: #{_lambda_.1} parent=5 // pred_check_branch
      %162 = sbr.rel (%p159) target = $region32
    $region31: #{_lambda_.1} parent=5 // pred_region
      %s163 = ssub.s32 %s9, 1
      %p164 = pneg %p42
      %p165 = pneg %p39
      %s166 = smul.u32 2, %s19
      %p167 = scmp.lt.s32.totalorder %s18, 1
      %s168 = scalar_select %p167, %s18, 1
      %p169 = scmp.lt.s32.totalorder %s166, 1
      %s170 = scalar_select %p169, %s166, 1
      %s171 = smul.addr %s168, 52
      %s172 = sadd.s32 %s170, %s171
      %s173 = smul.addr %s172, 4
      %s174 = scalar_lea.vmem %s1, %s173
      %p175 = pneg %p70
      %p176 = pneg %p67
      %p177 = pneg %p91
      %p178 = pneg %p88
      %p179 = pneg %p119
      %p180 = pneg %p116
      %s181 = smul.u32 2, %s19
      %p182 = scmp.lt.s32.totalorder %s18, 1
      %s183 = scalar_select %p182, %s18, 1
      %p184 = scmp.lt.s32.totalorder %s181, 1
      %s185 = scalar_select %p184, %s181, 1
      %s186 = smul.addr %s183, 24
      %s187 = sadd.s32 %s185, %s186
      %s188 = smul.addr %s187, 4
      %s189 = scalar_lea.vmem %s3, %s188
      %s190 = smul.u32 2, %s19
      %p191 = scmp.lt.s32.totalorder %s18, 1
      %s192 = scalar_select %p191, %s18, 1
      %p193 = scmp.lt.s32.totalorder %s190, 1
      %s194 = scalar_select %p193, %s190, 1
      %s195 = smul.addr %s192, 52
      %s196 = sadd.s32 %s194, %s195
      %s197 = smul.addr %s196, 4
      %s198 = scalar_lea.vmem %s1, %s197
      %s199 = smul.u32 2, %s19
      %s200 = smul.u32 2, %s19
      %p201 = scmp.lt.s32.totalorder %s18, 1
      %s202 = scalar_select %p201, %s18, 1
      %p203 = scmp.lt.s32.totalorder %s200, 1
      %s204 = scalar_select %p203, %s200, 1
      %s205 = smul.addr %s202, 24
      %s206 = sadd.s32 %s204, %s205
      %s207 = smul.addr %s206, 4
      %s208 = scalar_lea.vmem %s3, %s207
      %s209 = smul.u32 2, %s19
      %v211 = vld [vmem:[%s0] sm:$0xff]
      %v212 = vld [vmem:[%s0 + $0x8] sm:$0xff]
      %v213 = vld [vmem:[%s0 + $0x10] sm:$0xff]
      %v214 = vld [vmem:[%s0 + $0x18] sm:$0xff]
      %v215 = vld [vmem:[%s0 + $0x20] sm:$0xff]
      %v216 = vld [vmem:[%s0 + $0x28] sm:$0xff]
      %v217 = vld [vmem:[%s0 + $0x30] sm:$0xff]
      %v218 = vld [vmem:[%s0 + $0x38] sm:$0xff]
      %v219 = vld [vmem:[%s0 + $0x40] sm:$0xff]
      %v220 = vld [vmem:[%s0 + $0x48] sm:$0xff]
      %v221 = vld [vmem:[%s0 + $0x50] sm:$0xff]
      %v222 = vld [vmem:[%s0 + $0x58] sm:$0xff]
      %v223 = vld [vmem:[%s198] sm:$0xff]
      %v224 = vld [vmem:[%s198 + $0x8] sm:$0xff]
      %v225 = vld [vmem:[%s198 + $0x10] sm:$0xff]
      %v226 = vld [vmem:[%s198 + $0x18] sm:$0xff]
      %v227 = vld [vmem:[%s198 + $0x20] sm:$0xff]
      %v228 = vld [vmem:[%s198 + $0x28] sm:$0xff]
      %v229 = vld [vmem:[%s198 + $0x30] sm:$0xff]
      %v230 = vld [vmem:[%s198 + $0x38] sm:$0xff]
      %v231 = vld [vmem:[%s198 + $0x40] sm:$0xff]
      %v232 = vld [vmem:[%s198 + $0x48] sm:$0xff]
      %v233 = vld [vmem:[%s198 + $0x50] sm:$0xff]
      %v234 = vld [vmem:[%s198 + $0x58] sm:$0xff]
      %v235 = vld [vmem:[%s198 + $0x60] sm:$0xff]
      %v236 = vld [vmem:[%s198 + $0x68] sm:$0xff]
      %v237 = vld [vmem:[%s198 + $0x70] sm:$0xff]
      %v238 = vld [vmem:[%s198 + $0x78] sm:$0xff]
      %v239 = vld [vmem:[%s198 + $0x80] sm:$0xff]
      %v240 = vld [vmem:[%s198 + $0x88] sm:$0xff]
      %v241 = vld [vmem:[%s198 + $0x90] sm:$0xff]
      %v242 = vld [vmem:[%s198 + $0x98] sm:$0xff]
      %v243 = vld [vmem:[%s198 + $0xa0] sm:$0xff]
      %v244 = vld [vmem:[%s198 + $0xa8] sm:$0xff]
      %v245 = vld [vmem:[%s198 + $0xb0] sm:$0xff]
      %v246 = vld [vmem:[%s198 + $0xb8] sm:$0xff]
      %v247 = vld [vmem:[%s198 + $0xc0] sm:$0xff]
      %v248 = vld [vmem:[%s198 + $0xc8] sm:$0xff]
      %v249 = vld [vmem:[%s2] sm:$0xff]
      %v250 = vld [vmem:[%s2 + $0x8] sm:$0xff]
      %v251 = vld [vmem:[%s2 + $0x10] sm:$0xff]
      %v252 = vld [vmem:[%s2 + $0x18] sm:$0xff]
      %v253 = vld [vmem:[%s2 + $0x20] sm:$0xff]
      %v254 = vld [vmem:[%s2 + $0x28] sm:$0xff]
      %v255 = vld [vmem:[%s2 + $0x30] sm:$0xff]
      %v256 = vld [vmem:[%s2 + $0x38] sm:$0xff]
      %v257 = vld [vmem:[%s2 + $0x40] sm:$0xff]
      %v258 = vld [vmem:[%s2 + $0x48] sm:$0xff]
      %v259 = vld [vmem:[%s2 + $0x50] sm:$0xff]
      %v260 = vld [vmem:[%s2 + $0x58] sm:$0xff]
      %262 = vset.pattern.permute.xlu0 0
      %263 = vperm.xlu0 %262, %v249
      %v264 = vpop.permute.xlu0 %263
      %267 = vset.pattern.permute.xlu0 0
      %268 = vperm.xlu0 %267, %v250
      %v269 = vpop.permute.xlu0 %268
      %272 = vset.pattern.permute.xlu0 0
      %273 = vperm.xlu0 %272, %v251
      %v274 = vpop.permute.xlu0 %273
      %277 = vset.pattern.permute.xlu0 0
      %278 = vperm.xlu0 %277, %v252
      %v279 = vpop.permute.xlu0 %278
      %282 = vset.pattern.permute.xlu0 0
      %283 = vperm.xlu0 %282, %v253
      %v284 = vpop.permute.xlu0 %283
      %287 = vset.pattern.permute.xlu0 0
      %288 = vperm.xlu0 %287, %v254
      %v289 = vpop.permute.xlu0 %288
      %292 = vset.pattern.permute.xlu0 0
      %293 = vperm.xlu0 %292, %v255
      %v294 = vpop.permute.xlu0 %293
      %297 = vset.pattern.permute.xlu0 0
      %298 = vperm.xlu0 %297, %v256
      %v299 = vpop.permute.xlu0 %298
      %302 = vset.pattern.permute.xlu0 0
      %303 = vperm.xlu0 %302, %v257
      %v304 = vpop.permute.xlu0 %303
      %307 = vset.pattern.permute.xlu0 0
      %308 = vperm.xlu0 %307, %v258
      %v309 = vpop.permute.xlu0 %308
      %312 = vset.pattern.permute.xlu0 0
      %313 = vperm.xlu0 %312, %v259
      %v314 = vpop.permute.xlu0 %313
      %317 = vset.pattern.permute.xlu0 0
      %318 = vperm.xlu0 %317, %v260
      %v319 = vpop.permute.xlu0 %318
      %v333 = vunpack.c.l.b16 %v211
      %v334 = vunpack.c.h.b16 %v211
      %v335 = vunpack.c.l.b16 %v212
      %v336 = vunpack.c.h.b16 %v212
      %v337 = vunpack.c.l.b16 %v213
      %v338 = vunpack.c.h.b16 %v213
      %v339 = vunpack.c.l.b16 %v214
      %v340 = vunpack.c.h.b16 %v214
      %v341 = vunpack.c.l.b16 %v215
      %v342 = vunpack.c.h.b16 %v215
      %v343 = vunpack.c.l.b16 %v216
      %v344 = vunpack.c.h.b16 %v216
      %v345 = vunpack.c.l.b16 %v217
      %v346 = vunpack.c.h.b16 %v217
      %v347 = vunpack.c.l.b16 %v218
      %v348 = vunpack.c.h.b16 %v218
      %v349 = vunpack.c.l.b16 %v219
      %v350 = vunpack.c.h.b16 %v219
      %v351 = vunpack.c.l.b16 %v220
      %v352 = vunpack.c.h.b16 %v220
      %v353 = vunpack.c.l.b16 %v221
      %v354 = vunpack.c.h.b16 %v221
      %v355 = vunpack.c.l.b16 %v222
      %v356 = vunpack.c.h.b16 %v222
      %v357 = vpack.c.b16 %v335, %v333
      %v358 = vpack.c.b16 %v336, %v334
      %v359 = vpack.c.b16 %v339, %v337
      %v360 = vpack.c.b16 %v340, %v338
      %v361 = vpack.c.b16 %v343, %v341
      %v362 = vpack.c.b16 %v344, %v342
      %v363 = vpack.c.b16 %v347, %v345
      %v364 = vpack.c.b16 %v348, %v346
      %v365 = vpack.c.b16 %v351, %v349
      %v366 = vpack.c.b16 %v352, %v350
      %v367 = vpack.c.b16 %v355, %v353
      %v368 = vpack.c.b16 %v356, %v354
      %v401 = vunpack.c.l.b16 %v223
      %v402 = vunpack.c.h.b16 %v223
      %v403 = vunpack.c.l.b16 %v224
      %v404 = vunpack.c.h.b16 %v224
      %v405 = vunpack.c.l.b16 %v225
      %v406 = vunpack.c.h.b16 %v225
      %v407 = vunpack.c.l.b16 %v226
      %v408 = vunpack.c.h.b16 %v226
      %v409 = vunpack.c.l.b16 %v227
      %v410 = vunpack.c.h.b16 %v227
      %v411 = vunpack.c.l.b16 %v228
      %v412 = vunpack.c.h.b16 %v228
      %v413 = vunpack.c.l.b16 %v229
      %v414 = vunpack.c.h.b16 %v229
      %v415 = vunpack.c.l.b16 %v230
      %v416 = vunpack.c.h.b16 %v230
      %v417 = vunpack.c.l.b16 %v231
      %v418 = vunpack.c.h.b16 %v231
      %v419 = vunpack.c.l.b16 %v232
      %v420 = vunpack.c.h.b16 %v232
      %v421 = vunpack.c.l.b16 %v233
      %v422 = vunpack.c.h.b16 %v233
      %v423 = vunpack.c.l.b16 %v234
      %v424 = vunpack.c.h.b16 %v234
      %v425 = vunpack.c.l.b16 %v235
      %v426 = vunpack.c.h.b16 %v235
      %v427 = vunpack.c.l.b16 %v236
      %v428 = vunpack.c.h.b16 %v236
      %v429 = vunpack.c.l.b16 %v237
      %v430 = vunpack.c.h.b16 %v237
      %v431 = vunpack.c.l.b16 %v238
      %v432 = vunpack.c.h.b16 %v238
      %v433 = vunpack.c.l.b16 %v239
      %v434 = vunpack.c.h.b16 %v239
      %v435 = vunpack.c.l.b16 %v240
      %v436 = vunpack.c.h.b16 %v240
      %v437 = vunpack.c.l.b16 %v241
      %v438 = vunpack.c.h.b16 %v241
      %v439 = vunpack.c.l.b16 %v242
      %v440 = vunpack.c.h.b16 %v242
      %v441 = vunpack.c.l.b16 %v243
      %v442 = vunpack.c.h.b16 %v243
      %v443 = vunpack.c.l.b16 %v244
      %v444 = vunpack.c.h.b16 %v244
      %v445 = vunpack.c.l.b16 %v245
      %v446 = vunpack.c.h.b16 %v245
      %v447 = vunpack.c.l.b16 %v246
      %v448 = vunpack.c.h.b16 %v246
      %v449 = vunpack.c.l.b16 %v247
      %v450 = vunpack.c.h.b16 %v247
      %v451 = vunpack.c.l.b16 %v248
      %v452 = vunpack.c.h.b16 %v248
      %v453 = vpack.c.b16 %v403, %v401
      %v454 = vpack.c.b16 %v404, %v402
      %v455 = vpack.c.b16 %v407, %v405
      %v456 = vpack.c.b16 %v408, %v406
      %v457 = vpack.c.b16 %v411, %v409
      %v458 = vpack.c.b16 %v412, %v410
      %v459 = vpack.c.b16 %v415, %v413
      %v460 = vpack.c.b16 %v416, %v414
      %v461 = vpack.c.b16 %v419, %v417
      %v462 = vpack.c.b16 %v420, %v418
      %v463 = vpack.c.b16 %v423, %v421
      %v464 = vpack.c.b16 %v424, %v422
      %v465 = vpack.c.b16 %v427, %v425
      %v466 = vpack.c.b16 %v428, %v426
      %v467 = vpack.c.b16 %v431, %v429
      %v468 = vpack.c.b16 %v432, %v430
      %v469 = vpack.c.b16 %v435, %v433
      %v470 = vpack.c.b16 %v436, %v434
      %v471 = vpack.c.b16 %v439, %v437
      %v472 = vpack.c.b16 %v440, %v438
      %v473 = vpack.c.b16 %v443, %v441
      %v474 = vpack.c.b16 %v444, %v442
      %v475 = vpack.c.b16 %v447, %v445
      %v476 = vpack.c.b16 %v448, %v446
      %v477 = vpack.c.b16 %v451, %v449
      %v478 = vpack.c.b16 %v452, %v450
      %vm505 = vcmask 654336
      %v507 = vsel %vm505, %v358, 0
      %v510 = vsel %vm505, %v360, 0
      %v513 = vsel %vm505, %v362, 0
      %v516 = vsel %vm505, %v364, 0
      %v519 = vsel %vm505, %v366, 0
      %v522 = vsel %vm505, %v368, 0
      %524 = vmatprep.subr.bf16.mxu0 %v454
      %525 = vmatpush1.bf16.msra.mxu0 %v453
      %526 = vmatprep.subr.bf16.mxu0 %v456
      %527 = vmatpush1.bf16.msra.mxu0 %v455
      %528 = vmatprep.subr.bf16.mxu0 %v458
      %529 = vmatpush1.bf16.msra.mxu0 %v457
      %530 = vmatprep.subr.bf16.mxu0 %v460
      %531 = vmatpush1.bf16.msra.mxu0 %v459
      %532 = vmatprep.subr.bf16.mxu0 %v462
      %533 = vmatpush1.bf16.msra.mxu0 %v461
      %534 = vmatprep.subr.bf16.mxu0 %v464
      %535 = vmatpush1.bf16.msra.mxu0 %v463
      %536 = vmatprep.subr.bf16.mxu0 %v466
      %537 = vmatpush1.bf16.msra.mxu0 %v465
      %538 = vmatprep.subr.bf16.mxu0 %v468
      %539 = vmatpush1.bf16.msra.mxu0 %v467
      %540 = vmatprep.subr.bf16.mxu0 %v470
      %541 = vmatpush1.bf16.msra.mxu0 %v469
      %542 = vmatprep.subr.bf16.mxu0 %v472
      %543 = vmatpush1.bf16.msra.mxu0 %v471
      %544 = vmatprep.subr.bf16.mxu0 %v474
      %545 = vmatpush1.bf16.msra.mxu0 %v473
      %546 = vmatprep.subr.bf16.mxu0 %v476
      %547 = vmatpush1.bf16.msra.mxu0 %v475
      %548 = vmatprep.subr.bf16.mxu0 %v478
      %549 = vmatpush1.bf16.msra.mxu0 %v477
      %550 = vmatprep.subr.bf16.mxu0 0
      %551 = vmatpush1.bf16.msra.mxu0 0
      %552 = vmatprep.subr.bf16.mxu0 0
      %553 = vmatpush1.bf16.msra.mxu0 0
      %554 = vmatprep.subr.bf16.mxu0 0
      %555 = vmatpush1.bf16.msra.mxu0 0
      %556 = vmatprep.mubr.bf16.mxu0 %v507
      %557 = vmatmul.mubr.bf16.gmra.mrb[0].mxu0 %v357
      %v558 = vpop.f32.mrb[0].mxu0
      %v559 = vadd.f32 %v264, %v558
      %v560 = vpop.f32.mrb[0].mxu0
      %v561 = vadd.f32 %v264, %v560
      %v562 = vpop.f32.mrb[0].mxu0
      %v563 = vadd.f32 %v269, %v562
      %v564 = vpop.f32.mrb[0].mxu0
      %v565 = vadd.f32 %v269, %v564
      %566 = vmatprep.mubr.bf16.mxu0 %v510
      %567 = vmatmul.mubr.bf16.gmra.mrb[0].mxu0 %v359
      %v568 = vpop.f32.mrb[0].mxu0
      %v569 = vadd.f32 %v274, %v568
      %v570 = vpop.f32.mrb[0].mxu0
      %v571 = vadd.f32 %v274, %v570
      %v572 = vpop.f32.mrb[0].mxu0
      %v573 = vadd.f32 %v279, %v572
      %v574 = vpop.f32.mrb[0].mxu0
      %v575 = vadd.f32 %v279, %v574
      %576 = vmatprep.mubr.bf16.mxu0 %v513
      %577 = vmatmul.mubr.bf16.gmra.mrb[0].mxu0 %v361
      %v578 = vpop.f32.mrb[0].mxu0
      %v579 = vadd.f32 %v284, %v578
      %v580 = vpop.f32.mrb[0].mxu0
      %v581 = vadd.f32 %v284, %v580
      %v582 = vpop.f32.mrb[0].mxu0
      %v583 = vadd.f32 %v289, %v582
      %v584 = vpop.f32.mrb[0].mxu0
      %v585 = vadd.f32 %v289, %v584
      %586 = vmatprep.mubr.bf16.mxu0 %v516
      %587 = vmatmul.mubr.bf16.gmra.mrb[0].mxu0 %v363
      %v588 = vpop.f32.mrb[0].mxu0
      %v589 = vadd.f32 %v294, %v588
      %v590 = vpop.f32.mrb[0].mxu0
      %v591 = vadd.f32 %v294, %v590
      %v592 = vpop.f32.mrb[0].mxu0
      %v593 = vadd.f32 %v299, %v592
      %v594 = vpop.f32.mrb[0].mxu0
      %v595 = vadd.f32 %v299, %v594
      %596 = vmatprep.mubr.bf16.mxu0 %v519
      %597 = vmatmul.mubr.bf16.gmra.mrb[0].mxu0 %v365
      %v598 = vpop.f32.mrb[0].mxu0
      %v599 = vadd.f32 %v304, %v598
      %v600 = vpop.f32.mrb[0].mxu0
      %v601 = vadd.f32 %v304, %v600
      %v602 = vpop.f32.mrb[0].mxu0
      %v603 = vadd.f32 %v309, %v602
      %v604 = vpop.f32.mrb[0].mxu0
      %v605 = vadd.f32 %v309, %v604
      %606 = vmatprep.mubr.bf16.mxu0 %v522
      %607 = vmatmul.mubr.bf16.gmra.mrb[0].mxu0 %v367
      %v608 = vpop.f32.mrb[0].mxu0
      %v609 = vadd.f32 %v314, %v608
      %v610 = vpop.f32.mrb[0].mxu0
      %v611 = vadd.f32 %v314, %v610
      %v612 = vpop.f32.mrb[0].mxu0
      %v613 = vadd.f32 %v319, %v612
      %v614 = vpop.f32.mrb[0].mxu0
      %v615 = vadd.f32 %v319, %v614
      %616 = vdwg.mxu0
      %v617 = vmax.f32 %v559, 0.0
      %v618 = vmax.f32 %v561, 0.0
      %v619 = vmax.f32 %v563, 0.0
      %v620 = vmax.f32 %v565, 0.0
      %v621 = vmax.f32 %v569, 0.0
      %v622 = vmax.f32 %v571, 0.0
      %v623 = vmax.f32 %v573, 0.0
      %v624 = vmax.f32 %v575, 0.0
      %v625 = vmax.f32 %v579, 0.0
      %v626 = vmax.f32 %v581, 0.0
      %v627 = vmax.f32 %v583, 0.0
      %v628 = vmax.f32 %v585, 0.0
      %v629 = vmax.f32 %v589, 0.0
      %v630 = vmax.f32 %v591, 0.0
      %v631 = vmax.f32 %v593, 0.0
      %v632 = vmax.f32 %v595, 0.0
      %v633 = vmax.f32 %v599, 0.0
      %v634 = vmax.f32 %v601, 0.0
      %v635 = vmax.f32 %v603, 0.0
      %v636 = vmax.f32 %v605, 0.0
      %v637 = vmax.f32 %v609, 0.0
      %v638 = vmax.f32 %v611, 0.0
      %v639 = vmax.f32 %v613, 0.0
      %v640 = vmax.f32 %v615, 0.0
      %v641 = vpack.c.bf16 %v619, %v617
      %v642 = vpack.c.bf16 %v620, %v618
      %v643 = vpack.c.bf16 %v623, %v621
      %v644 = vpack.c.bf16 %v624, %v622
      %v645 = vpack.c.bf16 %v627, %v625
      %v646 = vpack.c.bf16 %v628, %v626
      %v647 = vpack.c.bf16 %v631, %v629
      %v648 = vpack.c.bf16 %v632, %v630
      %v649 = vpack.c.bf16 %v635, %v633
      %v650 = vpack.c.bf16 %v636, %v634
      %v651 = vpack.c.bf16 %v639, %v637
      %v652 = vpack.c.bf16 %v640, %v638
      %v665 = vunpack.c.l.b16 %v641
      %v666 = vunpack.c.l.b16 %v642
      %v667 = vunpack.c.h.b16 %v641
      %v668 = vunpack.c.h.b16 %v642
      %v669 = vunpack.c.l.b16 %v643
      %v670 = vunpack.c.l.b16 %v644
      %v671 = vunpack.c.h.b16 %v643
      %v672 = vunpack.c.h.b16 %v644
      %v673 = vunpack.c.l.b16 %v645
      %v674 = vunpack.c.l.b16 %v646
      %v675 = vunpack.c.h.b16 %v645
      %v676 = vunpack.c.h.b16 %v646
      %v677 = vunpack.c.l.b16 %v647
      %v678 = vunpack.c.l.b16 %v648
      %v679 = vunpack.c.h.b16 %v647
      %v680 = vunpack.c.h.b16 %v648
      %v681 = vunpack.c.l.b16 %v649
      %v682 = vunpack.c.l.b16 %v650
      %v683 = vunpack.c.h.b16 %v649
      %v684 = vunpack.c.h.b16 %v650
      %v685 = vunpack.c.l.b16 %v651
      %v686 = vunpack.c.l.b16 %v652
      %v687 = vunpack.c.h.b16 %v651
      %v688 = vunpack.c.h.b16 %v652
      %v689 = vpack.c.b16 %v666, %v665
      %v690 = vpack.c.b16 %v668, %v667
      %v691 = vpack.c.b16 %v670, %v669
      %v692 = vpack.c.b16 %v672, %v671
      %v693 = vpack.c.b16 %v674, %v673
      %v694 = vpack.c.b16 %v676, %v675
      %v695 = vpack.c.b16 %v678, %v677
      %v696 = vpack.c.b16 %v680, %v679
      %v697 = vpack.c.b16 %v682, %v681
      %v698 = vpack.c.b16 %v684, %v683
      %v699 = vpack.c.b16 %v686, %v685
      %v700 = vpack.c.b16 %v688, %v687
      %713 = vst [vmem:[%s208] sm:$0xff] %v689
      %714 = vst [vmem:[%s208 + $0x8] sm:$0xff] %v690
      %715 = vst [vmem:[%s208 + $0x10] sm:$0xff] %v691
      %716 = vst [vmem:[%s208 + $0x18] sm:$0xff] %v692
      %717 = vst [vmem:[%s208 + $0x20] sm:$0xff] %v693
      %718 = vst [vmem:[%s208 + $0x28] sm:$0xff] %v694
      %719 = vst [vmem:[%s208 + $0x30] sm:$0xff] %v695
      %720 = vst [vmem:[%s208 + $0x38] sm:$0xff] %v696
      %721 = vst [vmem:[%s208 + $0x40] sm:$0xff] %v697
      %722 = vst [vmem:[%s208 + $0x48] sm:$0xff] %v698
      %723 = vst [vmem:[%s208 + $0x50] sm:$0xff] %v699
      %724 = vst [vmem:[%s208 + $0x58] sm:$0xff] %v700
      %s725 = smul.u32 2, %s19
      %p726 = scmp.lt.s32.totalorder %s18, 1
      %s727 = scalar_select %p726, %s18, 1
      %p728 = scmp.lt.s32.totalorder %s725, 1
      %s729 = scalar_select %p728, %s725, 1
      %s730 = smul.addr %s727, 24
      %s731 = sadd.s32 %s729, %s730
      %s732 = smul.addr %s731, 4
      %s733 = scalar_lea.vmem %s3, %s732
      // Predicated region
      $region33: #{_lambda_.1} parent=31 // pred_check
        %p734 = pneg %p116
      $region34: #{_lambda_.1} parent=31 // pred_check_branch
        %736 = sbr.rel (%p734) target = $region36
      $region35: #{_lambda_.1} parent=31 // pred_region
        %s737 = smul.u32 2, %s19
      $region36: #{_lambda_.1} parent=31 // pred_fallthru
        _
    $region32: #{_lambda_.1} parent=5 // pred_fallthru
      _
    %p738 = scmp.le.s32.totalorder 2, %s9
    // Predicated region
    $region37: #{_lambda_.1} parent=5 // pred_check
      %p739 = pneg %p738
    $region38: #{_lambda_.1} parent=5 // pred_check_branch
      %741 = sbr.rel (%p739) target = $region40
    $region39: #{_lambda_.1} parent=5 // pred_region
      %s742 = ssub.s32 %s9, 2
      // Predicated region
      $region41: #{_lambda_.1} parent=39 // pred_check
        %p743 = pneg %p122
      $region42: #{_lambda_.1} parent=39 // pred_check_branch
        %745 = sbr.rel (%p743) target = $region44
      $region43: #{_lambda_.1} parent=39 // pred_region
        %s746 = smul.u32 2, %s21
        %p747 = scmp.lt.s32.totalorder %s20, 1
        %s748 = scalar_select %p747, %s20, 1
        %p749 = scmp.lt.s32.totalorder %s746, 1
        %s750 = scalar_select %p749, %s746, 1
        %s751 = smul.addr %s748, 24
        %s752 = sadd.s32 %s750, %s751
        %s753 = smul.addr %s752, 4
        %s754 = scalar_lea.vmem %s3, %s753
      $region44: #{_lambda_.1} parent=39 // pred_fallthru
        _
    $region40: #{_lambda_.1} parent=5 // pred_fallthru
      _
  $region6: #{_lambda_.1} parent=0 // loop_footer
    %s13 = sadd.s32 1, %s9
  $region7: #{_lambda_.1} parent=0 // loop_footer_branch
    %8 = sbr.rel target = $region3
  $region8: #{_lambda_.1} parent=0 // loop_exit
    _

</llo_original>
